<compile_context>
chip_gen: v5e
topology: v5e:2x2
jax: 0.10.0
libtpu: 0.0.40
codegen_flags: <defaults>
</compile_context>

<pallas_src>
import math
import functools

import jax
import jax.numpy as jnp
import numpy as np
from jax.experimental import pallas as pl
from jax.experimental.pallas import tpu as pltpu


# ----------------------------------------------------------------------------
# Fused kernel: the whole encoder+decoder on one batch tile.
# ----------------------------------------------------------------------------
def _fused_autoencoder_kernel(x_ref, *refs):
    """refs = (w1, b1, w2, b2, ..., wL, bL, o_ref).

    x_ref : (T, nin0)     input tile in the module's [batch, features] layout
    w_k   : (nout, nin)   PyTorch nn.Linear layout, resident across the grid
    b_k   : (nout, 1)     bias column, broadcast over the batch lanes
    o_ref : (nout_L, T)   output tile, lane-dense [features, batch]
    """
    o_ref = refs[-1]
    wb = refs[:-1]
    n_layers = len(wb) // 2
    # In-kernel transpose (XLU): batch moves onto the 128-wide lane axis, so the
    # whole layer chain runs lane-dense with no wrapper-side HBM transpose pass.
    h = x_ref[...].astype(jnp.float32).T
    for k in range(n_layers):                      # static unroll, traced once
        w = wb[2 * k][...].astype(jnp.float32)
        b = wb[2 * k + 1][...].astype(jnp.float32)
        h = jnp.dot(w, h, preferred_element_type=jnp.float32) + b
        h = jnp.maximum(h, 0.0)                    # ReLU == module's self.act
    o_ref[...] = h.astype(o_ref.dtype)


# ----------------------------------------------------------------------------
# Batch-tile selection (generation aware).
# ----------------------------------------------------------------------------
_MAX_BATCH_TILE = 1024   # beyond ~1024 lanes the live f32 activation chain spills vregs


def _min_grid_steps():
    """>= 2 grid steps on 2-TC chips (v7x) so 'parallel' can shard across cores."""
    try:
        kind = jax.devices()[0].device_kind.lower()
    except Exception:
        return 1
    return 2 if "v7" in kind else 1


def _pick_batch_tile(B, *, min_grid, max_tile=_MAX_BATCH_TILE):
    """Returns (batch_tile, padded_batch)."""
    if min_grid <= 1 and B <= max_tile:
        # Single TC: one full-extent tile, no padding, no per-step overhead.
        return B, B
    B_pad = pl.cdiv(B, 128) * 128                  # keep tiles 128-lane aligned
    cap = B_pad // min_grid
    if cap < 128:
        cap = B_pad                                # batch too small to split
    else:
        cap = min(max_tile, cap)
    tile = 128
    cand = 128
    while cand <= cap:                             # largest 128-multiple divisor
        if B_pad % cand == 0:
            tile = cand
        cand += 128
    return tile, B_pad


# ----------------------------------------------------------------------------
# Forward wrapper: decoder(encoder(x)) in one pallas_call.
# ----------------------------------------------------------------------------
def autoencoder_forward(x, params, *, batch_tile=None, out_layout="FB"):
    """Forward pass for x of shape [batch, nlayers[0]].

    out_layout:
      "FB" (default): returns [nlayers[0], batch]  — lane-dense, no transposes
      "BF":           returns [batch, nlayers[0]]  — exact nn.Module layout
    """
    B, nin0 = x.shape
    if batch_tile is None:
        batch_tile, B_pad = _pick_batch_tile(B, min_grid=_min_grid_steps())
    else:
        B_pad = pl.cdiv(B, batch_tile) * batch_tile
        assert batch_tile == B_pad or batch_tile % 128 == 0, (
            "batch tile must be the full (padded) batch or a multiple of 128 lanes")
    if B_pad != B:
        x = jnp.pad(x, ((0, B_pad - B), (0, 0)))   # masked-free bounded tiles

    nout_last = params[-1][0].shape[0]

    operands = [x]
    in_specs = [pl.BlockSpec((batch_tile, nin0), lambda i: (i, 0))]
    for (w, b) in params:
        operands.append(w)
        in_specs.append(pl.BlockSpec(w.shape, lambda i: (0, 0)))   # resident W
        operands.append(b)
        in_specs.append(pl.BlockSpec(b.shape, lambda i: (0, 0)))   # resident b

    out_fb = pl.pallas_call(
        _fused_autoencoder_kernel,
        out_shape=jax.ShapeDtypeStruct((nout_last, B_pad), x.dtype),
        grid_spec=pltpu.PrefetchScalarGridSpec(
            num_scalar_prefetch=0,
            grid=(B_pad // batch_tile,),
            in_specs=in_specs,
            out_specs=pl.BlockSpec((nout_last, batch_tile), lambda i: (0, i)),
        ),
        compiler_params=pltpu.CompilerParams(
            dimension_semantics=("parallel",),     # shard batch tiles across TCs
        ),
    )(*operands)

    if B_pad != B:
        out_fb = out_fb[:, :B]
    if out_layout == "BF":                         # compatibility layout only
        return out_fb.T
    return out_fb


# ----------------------------------------------------------------------------
# Parameter construction (Xavier-uniform, mirroring the module's init).
# ----------------------------------------------------------------------------
def init_autoencoder_params(nlayers, key):
    """Per layer: (weight (nout, nin), bias (nout, 1)) — kernel-ready layout."""
    enc_pairs = list(zip(nlayers[:-1], nlayers[1:]))
    dec_pairs = list(zip(nlayers[-1:0:-1], nlayers[-2::-1]))
    params = []
    for (nin, nout) in enc_pairs + dec_pairs:
        # torch Linear weight shape = (nout, nin); module's bound uses dim sum
        bound = math.sqrt(6.0) / math.sqrt(nin + nout)
        key, kw, kb = jax.random.split(key, 3)
        w = jax.random.uniform(kw, (nout, nin), jnp.float32, -bound, bound)
        b = jax.random.uniform(kb, (nout, 1), jnp.float32, -bound, bound)
        params.append((w, b))
    return params


# Pure-JAX reference for the correctness check (module layout [B, F]).
def autoencoder_forward_ref(x, params):
    for (w, b) in params:
        x = jnp.maximum(x @ w.T + b[:, 0], 0.0)
    return x


# ----------------------------------------------------------------------------
if __name__ == "__main__":
    key = jax.random.PRNGKey(0)
    nlayers = [32, 16, 8]          # encoder 32->16->8, decoder 8->16->32
    batch = 256                    # batch sits on the 128-wide lane axis

    kx, kp = jax.random.split(key)
    x = jax.random.normal(kx, (batch, nlayers[0]), jnp.float32)
    params = init_autoencoder_params(nlayers, kp)

    # Performance path: auto tile selection, lane-dense [F, B] output, no
    # wrapper-side transposes.
    fwd = jax.jit(functools.partial(autoencoder_forward, out_layout="FB"))
    out_fb = jax.block_until_ready(fwd(x, params))         # [nlayers[0], batch]

    ref = autoencoder_forward_ref(x, params)                # [batch, nlayers[0]]
    np.testing.assert_allclose(np.asarray(out_fb).T, np.asarray(ref),
                               rtol=1e-5, atol=1e-5)
    assert out_fb.shape == (nlayers[0], batch)

    # nn.Module-layout compatibility path ([B, F] out), same numerics.
    fwd_bf = jax.jit(functools.partial(autoencoder_forward, out_layout="BF"))
    out_bf = jax.block_until_ready(fwd_bf(x, params))
    np.testing.assert_allclose(np.asarray(out_bf), np.asarray(ref),
                               rtol=1e-5, atol=1e-5)
    assert out_bf.shape == (batch, nlayers[0])

    print("KERNEL_OK")
</pallas_src>

<mosaic_0001>
module attributes {stable_mosaic.version = 11 : i64} {
  func.func @_fused_autoencoder_kernel(%arg0: i32, %arg1: memref<256x32xf32, #tpu.memory_space<vmem>>, %arg2: memref<16x32xf32, #tpu.memory_space<vmem>>, %arg3: memref<16x1xf32, #tpu.memory_space<vmem>>, %arg4: memref<8x16xf32, #tpu.memory_space<vmem>>, %arg5: memref<8x1xf32, #tpu.memory_space<vmem>>, %arg6: memref<16x8xf32, #tpu.memory_space<vmem>>, %arg7: memref<16x1xf32, #tpu.memory_space<vmem>>, %arg8: memref<32x16xf32, #tpu.memory_space<vmem>>, %arg9: memref<32x1xf32, #tpu.memory_space<vmem>>, %arg10: memref<32x256xf32, #tpu.memory_space<vmem>>) attributes {dimension_semantics = [#tpu.dimension_semantics<parallel>], iteration_bounds = array<i64: 1>, scalar_prefetch = 0 : i64, scratch_operands = 0 : i64, tpu.core_type = #tpu.core_type<tc>, window_params = [{transform_indices = @transform_0, window_bounds = array<i64: 256, 32>}, {pipeline_mode = #tpu.pipeline_mode<synchronous>, transform_indices = @transform_1, window_bounds = array<i64: 16, 32>}, {pipeline_mode = #tpu.pipeline_mode<synchronous>, transform_indices = @transform_2, window_bounds = array<i64: 16, 1>}, {pipeline_mode = #tpu.pipeline_mode<synchronous>, transform_indices = @transform_3, window_bounds = array<i64: 8, 16>}, {pipeline_mode = #tpu.pipeline_mode<synchronous>, transform_indices = @transform_4, window_bounds = array<i64: 8, 1>}, {pipeline_mode = #tpu.pipeline_mode<synchronous>, transform_indices = @transform_5, window_bounds = array<i64: 16, 8>}, {pipeline_mode = #tpu.pipeline_mode<synchronous>, transform_indices = @transform_6, window_bounds = array<i64: 16, 1>}, {pipeline_mode = #tpu.pipeline_mode<synchronous>, transform_indices = @transform_7, window_bounds = array<i64: 32, 16>}, {pipeline_mode = #tpu.pipeline_mode<synchronous>, transform_indices = @transform_8, window_bounds = array<i64: 32, 1>}, {transform_indices = @transform_9, window_bounds = array<i64: 32, 256>}]} {
    %c0 = arith.constant 0 : index
    %c0_0 = arith.constant 0 : index
    %0 = vector.load %arg1[%c0, %c0_0] : memref<256x32xf32, #tpu.memory_space<vmem>>, vector<256x32xf32>
    %1 = tpu.transpose %0, [1, 0] : vector<256x32xf32> -> vector<32x256xf32>
    %c0_1 = arith.constant 0 : index
    %c0_2 = arith.constant 0 : index
    %2 = vector.load %arg2[%c0_1, %c0_2] : memref<16x32xf32, #tpu.memory_space<vmem>>, vector<16x32xf32>
    %c0_3 = arith.constant 0 : index
    %c0_4 = arith.constant 0 : index
    %3 = vector.load %arg3[%c0_3, %c0_4] : memref<16x1xf32, #tpu.memory_space<vmem>>, vector<16x1xf32>
    %cst = arith.constant dense<0.000000e+00> : vector<16x256xf32>
    %4 = tpu.matmul %2, %1, %cst {dimension_numbers = #tpu.dot_dimension_numbers<[1], [0], [0], [1], [0, 0, 1, 1], [], []>} : vector<16x32xf32>, vector<32x256xf32>, vector<16x256xf32> -> vector<16x256xf32>
    %5 = vector.broadcast %3 : vector<16x1xf32> to vector<16x256xf32>
    %6 = arith.addf %4, %5 : vector<16x256xf32>
    %cst_5 = arith.constant 0.000000e+00 : f32
    %7 = vector.broadcast %cst_5 : f32 to vector<16x256xf32>
    %8 = arith.maximumf %6, %7 : vector<16x256xf32>
    %c0_6 = arith.constant 0 : index
    %c0_7 = arith.constant 0 : index
    %9 = vector.load %arg4[%c0_6, %c0_7] : memref<8x16xf32, #tpu.memory_space<vmem>>, vector<8x16xf32>
    %c0_8 = arith.constant 0 : index
    %c0_9 = arith.constant 0 : index
    %10 = vector.load %arg5[%c0_8, %c0_9] : memref<8x1xf32, #tpu.memory_space<vmem>>, vector<8x1xf32>
    %cst_10 = arith.constant dense<0.000000e+00> : vector<8x256xf32>
    %11 = tpu.matmul %9, %8, %cst_10 {dimension_numbers = #tpu.dot_dimension_numbers<[1], [0], [0], [1], [0, 0, 1, 1], [], []>} : vector<8x16xf32>, vector<16x256xf32>, vector<8x256xf32> -> vector<8x256xf32>
    %12 = vector.broadcast %10 : vector<8x1xf32> to vector<8x256xf32>
    %13 = arith.addf %11, %12 : vector<8x256xf32>
    %cst_11 = arith.constant 0.000000e+00 : f32
    %14 = vector.broadcast %cst_11 : f32 to vector<8x256xf32>
    %15 = arith.maximumf %13, %14 : vector<8x256xf32>
    %c0_12 = arith.constant 0 : index
    %c0_13 = arith.constant 0 : index
    %16 = vector.load %arg6[%c0_12, %c0_13] : memref<16x8xf32, #tpu.memory_space<vmem>>, vector<16x8xf32>
    %c0_14 = arith.constant 0 : index
    %c0_15 = arith.constant 0 : index
    %17 = vector.load %arg7[%c0_14, %c0_15] : memref<16x1xf32, #tpu.memory_space<vmem>>, vector<16x1xf32>
    %cst_16 = arith.constant dense<0.000000e+00> : vector<16x256xf32>
    %18 = tpu.matmul %16, %15, %cst_16 {dimension_numbers = #tpu.dot_dimension_numbers<[1], [0], [0], [1], [0, 0, 1, 1], [], []>} : vector<16x8xf32>, vector<8x256xf32>, vector<16x256xf32> -> vector<16x256xf32>
    %19 = vector.broadcast %17 : vector<16x1xf32> to vector<16x256xf32>
    %20 = arith.addf %18, %19 : vector<16x256xf32>
    %cst_17 = arith.constant 0.000000e+00 : f32
    %21 = vector.broadcast %cst_17 : f32 to vector<16x256xf32>
    %22 = arith.maximumf %20, %21 : vector<16x256xf32>
    %c0_18 = arith.constant 0 : index
    %c0_19 = arith.constant 0 : index
    %23 = vector.load %arg8[%c0_18, %c0_19] : memref<32x16xf32, #tpu.memory_space<vmem>>, vector<32x16xf32>
    %c0_20 = arith.constant 0 : index
    %c0_21 = arith.constant 0 : index
    %24 = vector.load %arg9[%c0_20, %c0_21] : memref<32x1xf32, #tpu.memory_space<vmem>>, vector<32x1xf32>
    %cst_22 = arith.constant dense<0.000000e+00> : vector<32x256xf32>
    %25 = tpu.matmul %23, %22, %cst_22 {dimension_numbers = #tpu.dot_dimension_numbers<[1], [0], [0], [1], [0, 0, 1, 1], [], []>} : vector<32x16xf32>, vector<16x256xf32>, vector<32x256xf32> -> vector<32x256xf32>
    %26 = vector.broadcast %24 : vector<32x1xf32> to vector<32x256xf32>
    %27 = arith.addf %25, %26 : vector<32x256xf32>
    %cst_23 = arith.constant 0.000000e+00 : f32
    %28 = vector.broadcast %cst_23 : f32 to vector<32x256xf32>
    %29 = arith.maximumf %27, %28 : vector<32x256xf32>
    %c0_24 = arith.constant 0 : index
    %c0_25 = arith.constant 0 : index
    %30 = vector.load %arg10[%c0_24, %c0_25] : memref<32x256xf32, #tpu.memory_space<vmem>>, vector<32x256xf32>
    tpu.vector_store %arg10[%c0_24, %c0_25], %29 {strides = array<i32>} : memref<32x256xf32, #tpu.memory_space<vmem>>, vector<32x256xf32>,
    return
  }
  func.func @transform_0(%arg0: i32) -> (i32, i32) {
    %c0_i32 = arith.constant 0 : i32
    %c0_i32_0 = arith.constant 0 : i32
    return %arg0, %c0_i32 : i32, i32
  }
  func.func @transform_1(%arg0: i32) -> (i32, i32) {
    %c0_i32 = arith.constant 0 : i32
    %c0_i32_0 = arith.constant 0 : i32
    %c0_i32_1 = arith.constant 0 : i32
    return %c0_i32, %c0_i32_0 : i32, i32
  }
  func.func @transform_2(%arg0: i32) -> (i32, i32) {
    %c0_i32 = arith.constant 0 : i32
    %c0_i32_0 = arith.constant 0 : i32
    %c0_i32_1 = arith.constant 0 : i32
    return %c0_i32, %c0_i32_0 : i32, i32
  }
  func.func @transform_3(%arg0: i32) -> (i32, i32) {
    %c0_i32 = arith.constant 0 : i32
    %c0_i32_0 = arith.constant 0 : i32
    %c0_i32_1 = arith.constant 0 : i32
    return %c0_i32, %c0_i32_0 : i32, i32
  }
  func.func @transform_4(%arg0: i32) -> (i32, i32) {
    %c0_i32 = arith.constant 0 : i32
    %c0_i32_0 = arith.constant 0 : i32
    %c0_i32_1 = arith.constant 0 : i32
    return %c0_i32, %c0_i32_0 : i32, i32
  }
  func.func @transform_5(%arg0: i32) -> (i32, i32) {
    %c0_i32 = arith.constant 0 : i32
    %c0_i32_0 = arith.constant 0 : i32
    %c0_i32_1 = arith.constant 0 : i32
    return %c0_i32, %c0_i32_0 : i32, i32
  }
  func.func @transform_6(%arg0: i32) -> (i32, i32) {
    %c0_i32 = arith.constant 0 : i32
    %c0_i32_0 = arith.constant 0 : i32
    %c0_i32_1 = arith.constant 0 : i32
    return %c0_i32, %c0_i32_0 : i32, i32
  }
  func.func @transform_7(%arg0: i32) -> (i32, i32) {
    %c0_i32 = arith.constant 0 : i32
    %c0_i32_0 = arith.constant 0 : i32
    %c0_i32_1 = arith.constant 0 : i32
    return %c0_i32, %c0_i32_0 : i32, i32
  }
  func.func @transform_8(%arg0: i32) -> (i32, i32) {
    %c0_i32 = arith.constant 0 : i32
    %c0_i32_0 = arith.constant 0 : i32
    %c0_i32_1 = arith.constant 0 : i32
    return %c0_i32, %c0_i32_0 : i32, i32
  }
  func.func @transform_9(%arg0: i32) -> (i32, i32) {
    %c0_i32 = arith.constant 0 : i32
    %c0_i32_0 = arith.constant 0 : i32
    return %c0_i32, %arg0 : i32, i32
  }
}

</mosaic_0001>

<llo_original>
// kernel: autoencoder_forward.1
$region0: #{autoencoder_forward.1}
  #allocation0 [shape = 'u32[]', space=smem, size = 0x4, offset = 0x4, fixed_abs, tag = 'smem constant byte address 0x4 - core index']
  #allocation1 [shape = 'u32[72,128]{1,0:T(1,128)}', space=vmem, size = 0x9000, scoped, tag = 'internal scratch']
  %s0 = inlined_call_operand.vmem [shape: f32[256,32], index: 0, kind: input, shape index: {}]
  %s1 = inlined_call_operand.vmem [shape: f32[16,32], index: 1, kind: input, shape index: {}]
  %s2 = inlined_call_operand.vmem [shape: f32[16,1], index: 2, kind: input, shape index: {}]
  %s3 = inlined_call_operand.vmem [shape: f32[8,16], index: 3, kind: input, shape index: {}]
  %s4 = inlined_call_operand.vmem [shape: f32[8,1], index: 4, kind: input, shape index: {}]
  %s5 = inlined_call_operand.vmem [shape: f32[16,8], index: 5, kind: input, shape index: {}]
  %s6 = inlined_call_operand.vmem [shape: f32[16,1], index: 6, kind: input, shape index: {}]
  %s7 = inlined_call_operand.vmem [shape: f32[32,16], index: 7, kind: input, shape index: {}]
  %s8 = inlined_call_operand.vmem [shape: f32[32,1], index: 8, kind: input, shape index: {}]
  %s9 = inlined_call_operand.hbm [shape: f32[32,256], index: 9, kind: output, shape index: {}]
  %s10 = sld [smem:[#allocation0]]
  $region46: #{autoencoder_forward.1} parent=0
    _
  %s12 = ssub.s32 1, %s10
  %s13 = scalar_select 0, %s12, %s10
  $region1: #{autoencoder_forward.1} parent=0
    #allocation2 [shape = 'u8[32768]{0}', space=vmem, size = 0x8000, scoped, tag = 'output window, operand 0, single buffered']
    #allocation3 [shape = 's32[1]{0}', space=sflag, size = 0x4, scoped, tag = 'scoped memory for autoencoder_forward.1']
    %14 = vsyncpa [#allocation3], 0
    // Predicated region
    $region2: #{autoencoder_forward.1} parent=1 // pred_check
      _
    $region3: #{autoencoder_forward.1} parent=1 // pred_check_branch
      %16 = sbr.rel (0) target = $region5
    $region4: #{autoencoder_forward.1} parent=1 // pred_region
      _
    $region5: #{autoencoder_forward.1} parent=1 // pred_fallthru
      _
    // Predicated region
    $region6: #{autoencoder_forward.1} parent=1 // pred_check
      _
    $region7: #{autoencoder_forward.1} parent=1 // pred_check_branch
      %18 = sbr.rel (0) target = $region9
    $region8: #{autoencoder_forward.1} parent=1 // pred_region
      _
    $region9: #{autoencoder_forward.1} parent=1 // pred_fallthru
      _
    // Predicated region
    $region10: #{autoencoder_forward.1} parent=1 // pred_check
      _
    $region11: #{autoencoder_forward.1} parent=1 // pred_check_branch
      %20 = sbr.rel (0) target = $region13
    $region12: #{autoencoder_forward.1} parent=1 // pred_region
      _
    $region13: #{autoencoder_forward.1} parent=1 // pred_fallthru
      _
    // Predicated region
    $region14: #{autoencoder_forward.1} parent=1 // pred_check
      _
    $region15: #{autoencoder_forward.1} parent=1 // pred_check_branch
      %22 = sbr.rel (0) target = $region17
    $region16: #{autoencoder_forward.1} parent=1 // pred_region
      _
    $region17: #{autoencoder_forward.1} parent=1 // pred_fallthru
      _
    // Predicated region
    $region18: #{autoencoder_forward.1} parent=1 // pred_check
      _
    $region19: #{autoencoder_forward.1} parent=1 // pred_check_branch
      %24 = sbr.rel (0) target = $region21
    $region20: #{autoencoder_forward.1} parent=1 // pred_region
      _
    $region21: #{autoencoder_forward.1} parent=1 // pred_fallthru
      _
    // Predicated region
    $region22: #{autoencoder_forward.1} parent=1 // pred_check
      _
    $region23: #{autoencoder_forward.1} parent=1 // pred_check_branch
      %26 = sbr.rel (0) target = $region25
    $region24: #{autoencoder_forward.1} parent=1 // pred_region
      _
    $region25: #{autoencoder_forward.1} parent=1 // pred_fallthru
      _
    // Predicated region
    $region26: #{autoencoder_forward.1} parent=1 // pred_check
      _
    $region27: #{autoencoder_forward.1} parent=1 // pred_check_branch
      %28 = sbr.rel (0) target = $region29
    $region28: #{autoencoder_forward.1} parent=1 // pred_region
      _
    $region29: #{autoencoder_forward.1} parent=1 // pred_fallthru
      _
    // Predicated region
    $region30: #{autoencoder_forward.1} parent=1 // pred_check
      _
    $region31: #{autoencoder_forward.1} parent=1 // pred_check_branch
      %30 = sbr.rel (0) target = $region33
    $region32: #{autoencoder_forward.1} parent=1 // pred_region
      _
    $region33: #{autoencoder_forward.1} parent=1 // pred_fallthru
      _
    // Predicated region
    $region34: #{autoencoder_forward.1} parent=1 // pred_check
      _
    $region35: #{autoencoder_forward.1} parent=1 // pred_check_branch
      %32 = sbr.rel (0) target = $region37
    $region36: #{autoencoder_forward.1} parent=1 // pred_region
      _
    $region37: #{autoencoder_forward.1} parent=1 // pred_fallthru
      _
    %v33 = vld [vmem:[%s0] sm:$0xff]
    %v34 = vld [vmem:[%s0 + $0x8] sm:$0xff]
    %v35 = vld [vmem:[%s0 + $0x10] sm:$0xff]
    %v36 = vld [vmem:[%s0 + $0x18] sm:$0xff]
    %v37 = vld [vmem:[%s0 + $0x20] sm:$0xff]
    %v38 = vld [vmem:[%s0 + $0x28] sm:$0xff]
    %v39 = vld [vmem:[%s0 + $0x30] sm:$0xff]
    %v40 = vld [vmem:[%s0 + $0x38] sm:$0xff]
    %v41 = vld [vmem:[%s0 + $0x40] sm:$0xff]
    %v42 = vld [vmem:[%s0 + $0x48] sm:$0xff]
    %v43 = vld [vmem:[%s0 + $0x50] sm:$0xff]
    %v44 = vld [vmem:[%s0 + $0x58] sm:$0xff]
    %v45 = vld [vmem:[%s0 + $0x60] sm:$0xff]
    %v46 = vld [vmem:[%s0 + $0x68] sm:$0xff]
    %v47 = vld [vmem:[%s0 + $0x70] sm:$0xff]
    %v48 = vld [vmem:[%s0 + $0x78] sm:$0xff]
    %v49 = vld [vmem:[%s0 + $0x80] sm:$0xff]
    %v50 = vld [vmem:[%s0 + $0x88] sm:$0xff]
    %v51 = vld [vmem:[%s0 + $0x90] sm:$0xff]
    %v52 = vld [vmem:[%s0 + $0x98] sm:$0xff]
    %v53 = vld [vmem:[%s0 + $0xa0] sm:$0xff]
    %v54 = vld [vmem:[%s0 + $0xa8] sm:$0xff]
    %v55 = vld [vmem:[%s0 + $0xb0] sm:$0xff]
    %v56 = vld [vmem:[%s0 + $0xb8] sm:$0xff]
    %v57 = vld [vmem:[%s0 + $0xc0] sm:$0xff]
    %v58 = vld [vmem:[%s0 + $0xc8] sm:$0xff]
    %v59 = vld [vmem:[%s0 + $0xd0] sm:$0xff]
    %v60 = vld [vmem:[%s0 + $0xd8] sm:$0xff]
    %v61 = vld [vmem:[%s0 + $0xe0] sm:$0xff]
    %v62 = vld [vmem:[%s0 + $0xe8] sm:$0xff]
    %v63 = vld [vmem:[%s0 + $0xf0] sm:$0xff]
    %v64 = vld [vmem:[%s0 + $0xf8] sm:$0xff]
    %v65 = vld [vmem:[%s1] sm:$0xff]
    %v66 = vld [vmem:[%s1 + $0x8] sm:$0xff]
    %v67 = vld [vmem:[%s2] sm:$0xff]
    %v68 = vld [vmem:[%s2 + $0x8] sm:$0xff]
    %70 = vset.pattern.permute.xlu0 0
    %71 = vperm.xlu0 %70, %v67
    %v72 = vpop.permute.xlu0 %71
    %75 = vset.pattern.permute.xlu0 0
    %76 = vperm.xlu0 %75, %v68
    %v77 = vpop.permute.xlu0 %76
    %vm79 = vcmask 261120
    %v81 = vsel %vm79, %v65, 0
    %v84 = vsel %vm79, %v66, 0
    %v87 = vsel %vm79, %v33, 0
    %v90 = vsel %vm79, %v34, 0
    %v93 = vsel %vm79, %v35, 0
    %v96 = vsel %vm79, %v36, 0
    %v99 = vsel %vm79, %v37, 0
    %v102 = vsel %vm79, %v38, 0
    %v105 = vsel %vm79, %v39, 0
    %v108 = vsel %vm79, %v40, 0
    %v111 = vsel %vm79, %v41, 0
    %v114 = vsel %vm79, %v42, 0
    %v117 = vsel %vm79, %v43, 0
    %v120 = vsel %vm79, %v44, 0
    %v123 = vsel %vm79, %v45, 0
    %v126 = vsel %vm79, %v46, 0
    %v129 = vsel %vm79, %v47, 0
    %v132 = vsel %vm79, %v48, 0
    %v135 = vsel %vm79, %v49, 0
    %v138 = vsel %vm79, %v50, 0
    %v141 = vsel %vm79, %v51, 0
    %v144 = vsel %vm79, %v52, 0
    %v147 = vsel %vm79, %v53, 0
    %v150 = vsel %vm79, %v54, 0
    %v153 = vsel %vm79, %v55, 0
    %v156 = vsel %vm79, %v56, 0
    %v159 = vsel %vm79, %v57, 0
    %v162 = vsel %vm79, %v58, 0
    %v165 = vsel %vm79, %v59, 0
    %v168 = vsel %vm79, %v60, 0
    %v171 = vsel %vm79, %v61, 0
    %v174 = vsel %vm79, %v62, 0
    %v177 = vsel %vm79, %v63, 0
    %v180 = vsel %vm79, %v64, 0
    %182 = vmatpush.xpose.msra.mxu0 %v132
    %183 = vmatpush.xpose.msra.mxu0 %v129
    %184 = vmatpush.xpose.msra.mxu0 %v126
    %185 = vmatpush.xpose.msra.mxu0 %v123
    %186 = vmatpush.xpose.msra.mxu0 %v120
    %187 = vmatpush.xpose.msra.mxu0 %v117
    %188 = vmatpush.xpose.msra.mxu0 %v114
    %189 = vmatpush.xpose.msra.mxu0 %v111
    %190 = vmatpush.xpose.msra.mxu0 %v108
    %191 = vmatpush.xpose.msra.mxu0 %v105
    %192 = vmatpush.xpose.msra.mxu0 %v102
    %193 = vmatpush.xpose.msra.mxu0 %v99
    %194 = vmatpush.xpose.msra.mxu0 %v96
    %195 = vmatpush.xpose.msra.mxu0 %v93
    %196 = vmatpush.xpose.msra.mxu0 %v90
    %197 = vmatpush.xpose.msra.mxu0 %v87
    %198 = vmatmul.f32.gmra.mxu0 %v81
    %v199 = vpop.f32.mrf.mxu0
    %v200 = vadd.f32 %v72, %v199
    %201 = vmatmul.f32.gmra.mxu0 %v84
    %v202 = vpop.f32.mrf.mxu0
    %v203 = vadd.f32 %v77, %v202
    %204 = vdwg.mxu0
    %205 = vmatpush.xpose.msra.mxu0 %v180
    %206 = vmatpush.xpose.msra.mxu0 %v177
    %207 = vmatpush.xpose.msra.mxu0 %v174
    %208 = vmatpush.xpose.msra.mxu0 %v171
    %209 = vmatpush.xpose.msra.mxu0 %v168
    %210 = vmatpush.xpose.msra.mxu0 %v165
    %211 = vmatpush.xpose.msra.mxu0 %v162
    %212 = vmatpush.xpose.msra.mxu0 %v159
    %213 = vmatpush.xpose.msra.mxu0 %v156
    %214 = vmatpush.xpose.msra.mxu0 %v153
    %215 = vmatpush.xpose.msra.mxu0 %v150
    %216 = vmatpush.xpose.msra.mxu0 %v147
    %217 = vmatpush.xpose.msra.mxu0 %v144
    %218 = vmatpush.xpose.msra.mxu0 %v141
    %219 = vmatpush.xpose.msra.mxu0 %v138
    %220 = vmatpush.xpose.msra.mxu0 %v135
    %221 = vmatmul.f32.gmra.mxu0 %v81
    %v222 = vpop.f32.mrf.mxu0
    %v223 = vadd.f32 %v72, %v222
    %224 = vmatmul.f32.gmra.mxu0 %v84
    %v225 = vpop.f32.mrf.mxu0
    %v226 = vadd.f32 %v77, %v225
    %227 = vdwg.mxu0
    %v228 = vmax.f32 %v200, 0.0
    %v229 = vmax.f32 %v223, 0.0
    %v230 = vmax.f32 %v203, 0.0
    %v231 = vmax.f32 %v226, 0.0
    %v232 = vld [vmem:[%s3] sm:$0xff]
    %v233 = vld [vmem:[%s4] sm:$0xff]
    %235 = vset.pattern.permute.xlu0 0
    %236 = vperm.xlu0 %235, %v233
    %v237 = vpop.permute.xlu0 %236
    %vm239 = vcmask 130048
    %v241 = vsel %vm239, %v232, 0
    %243 = vmatpush.msra.mxu0 0.0
    %244 = vmatpush.msra.mxu0 0.0
    %245 = vmatpush.msra.mxu0 0.0
    %246 = vmatpush.msra.mxu0 0.0
    %247 = vmatpush.msra.mxu0 0.0
    %248 = vmatpush.msra.mxu0 0.0
    %249 = vmatpush.msra.mxu0 0.0
    %250 = vmatpush.msra.mxu0 0.0
    %251 = vmatpush.msra.mxu0 0.0
    %252 = vmatpush.msra.mxu0 0.0
    %253 = vmatpush.msra.mxu0 0.0
    %254 = vmatpush.msra.mxu0 0.0
    %255 = vmatpush.msra.mxu0 0.0
    %256 = vmatpush.msra.mxu0 0.0
    %257 = vmatpush.msra.mxu0 %v230
    %258 = vmatpush.msra.mxu0 %v228
    %259 = vmatmul.f32.gmra.mxu0 %v241
    %v260 = vpop.f32.mrf.mxu0
    %v261 = vadd.f32 %v237, %v260
    %262 = vdwg.mxu0
    %263 = vmatpush.msra.mxu0 0.0
    %264 = vmatpush.msra.mxu0 0.0
    %265 = vmatpush.msra.mxu0 0.0
    %266 = vmatpush.msra.mxu0 0.0
    %267 = vmatpush.msra.mxu0 0.0
    %268 = vmatpush.msra.mxu0 0.0
    %269 = vmatpush.msra.mxu0 0.0
    %270 = vmatpush.msra.mxu0 0.0
    %271 = vmatpush.msra.mxu0 0.0
    %272 = vmatpush.msra.mxu0 0.0
    %273 = vmatpush.msra.mxu0 0.0
    %274 = vmatpush.msra.mxu0 0.0
    %275 = vmatpush.msra.mxu0 0.0
    %276 = vmatpush.msra.mxu0 0.0
    %277 = vmatpush.msra.mxu0 %v231
    %278 = vmatpush.msra.mxu0 %v229
    %279 = vmatmul.f32.gmra.mxu0 %v241
    %v280 = vpop.f32.mrf.mxu0
    %v281 = vadd.f32 %v237, %v280
    %282 = vdwg.mxu0
    %v283 = vmax.f32 %v261, 0.0
    %v284 = vmax.f32 %v281, 0.0
    %v285 = vld [vmem:[%s5] sm:$0xff]
    %v286 = vld [vmem:[%s5 + $0x8] sm:$0xff]
    %v287 = vld [vmem:[%s6] sm:$0xff]
    %v288 = vld [vmem:[%s6 + $0x8] sm:$0xff]
    %290 = vset.pattern.permute.xlu0 0
    %291 = vperm.xlu0 %290, %v287
    %v292 = vpop.permute.xlu0 %291
    %295 = vset.pattern.permute.xlu0 0
    %296 = vperm.xlu0 %295, %v288
    %v297 = vpop.permute.xlu0 %296
    %vm299 = vcmask 64512
    %v301 = vsel %vm299, %v285, 0
    %v304 = vsel %vm299, %v286, 0
    %306 = vmatpush.msra.mxu0 0.0
    %307 = vmatpush.msra.mxu0 0.0
    %308 = vmatpush.msra.mxu0 0.0
    %309 = vmatpush.msra.mxu0 0.0
    %310 = vmatpush.msra.mxu0 0.0
    %311 = vmatpush.msra.mxu0 0.0
    %312 = vmatpush.msra.mxu0 0.0
    %313 = vmatpush.msra.mxu0 0.0
    %314 = vmatpush.msra.mxu0 0.0
    %315 = vmatpush.msra.mxu0 0.0
    %316 = vmatpush.msra.mxu0 0.0
    %317 = vmatpush.msra.mxu0 0.0
    %318 = vmatpush.msra.mxu0 0.0
    %319 = vmatpush.msra.mxu0 0.0
    %320 = vmatpush.msra.mxu0 0.0
    %321 = vmatpush.msra.mxu0 %v283
    %322 = vmatmul.f32.gmra.mxu0 %v301
    %v323 = vpop.f32.mrf.mxu0
    %v324 = vadd.f32 %v292, %v323
    %325 = vmatmul.f32.gmra.mxu0 %v304
    %v326 = vpop.f32.mrf.mxu0
    %v327 = vadd.f32 %v297, %v326
    %328 = vdwg.mxu0
    %329 = vmatpush.msra.mxu0 0.0
    %330 = vmatpush.msra.mxu0 0.0
    %331 = vmatpush.msra.mxu0 0.0
    %332 = vmatpush.msra.mxu0 0.0
    %333 = vmatpush.msra.mxu0 0.0
    %334 = vmatpush.msra.mxu0 0.0
    %335 = vmatpush.msra.mxu0 0.0
    %336 = vmatpush.msra.mxu0 0.0
    %337 = vmatpush.msra.mxu0 0.0
    %338 = vmatpush.msra.mxu0 0.0
    %339 = vmatpush.msra.mxu0 0.0
    %340 = vmatpush.msra.mxu0 0.0
    %341 = vmatpush.msra.mxu0 0.0
    %342 = vmatpush.msra.mxu0 0.0
    %343 = vmatpush.msra.mxu0 0.0
    %344 = vmatpush.msra.mxu0 %v284
    %345 = vmatmul.f32.gmra.mxu0 %v301
    %v346 = vpop.f32.mrf.mxu0
    %v347 = vadd.f32 %v292, %v346
    %348 = vmatmul.f32.gmra.mxu0 %v304
    %v349 = vpop.f32.mrf.mxu0
    %v350 = vadd.f32 %v297, %v349
    %351 = vdwg.mxu0
    %v352 = vmax.f32 %v324, 0.0
    %v353 = vmax.f32 %v347, 0.0
    %v354 = vmax.f32 %v327, 0.0
    %v355 = vmax.f32 %v350, 0.0
    %v356 = vld [vmem:[%s7] sm:$0xff]
    %v357 = vld [vmem:[%s7 + $0x8] sm:$0xff]
    %v358 = vld [vmem:[%s7 + $0x10] sm:$0xff]
    %v359 = vld [vmem:[%s7 + $0x18] sm:$0xff]
    %v360 = vld [vmem:[%s8] sm:$0xff]
    %v361 = vld [vmem:[%s8 + $0x8] sm:$0xff]
    %v362 = vld [vmem:[%s8 + $0x10] sm:$0xff]
    %v363 = vld [vmem:[%s8 + $0x18] sm:$0xff]
    %365 = vset.pattern.permute.xlu0 0
    %366 = vperm.xlu0 %365, %v360
    %v367 = vpop.permute.xlu0 %366
    %370 = vset.pattern.permute.xlu0 0
    %371 = vperm.xlu0 %370, %v361
    %v372 = vpop.permute.xlu0 %371
    %375 = vset.pattern.permute.xlu0 0
    %376 = vperm.xlu0 %375, %v362
    %v377 = vpop.permute.xlu0 %376
    %380 = vset.pattern.permute.xlu0 0
    %381 = vperm.xlu0 %380, %v363
    %v382 = vpop.permute.xlu0 %381
    %v385 = vsel %vm239, %v356, 0
    %v388 = vsel %vm239, %v357, 0
    %v391 = vsel %vm239, %v358, 0
    %v394 = vsel %vm239, %v359, 0
    %396 = vmatpush.msra.mxu0 0.0
    %397 = vmatpush.msra.mxu0 0.0
    %398 = vmatpush.msra.mxu0 0.0
    %399 = vmatpush.msra.mxu0 0.0
    %400 = vmatpush.msra.mxu0 0.0
    %401 = vmatpush.msra.mxu0 0.0
    %402 = vmatpush.msra.mxu0 0.0
    %403 = vmatpush.msra.mxu0 0.0
    %404 = vmatpush.msra.mxu0 0.0
    %405 = vmatpush.msra.mxu0 0.0
    %406 = vmatpush.msra.mxu0 0.0
    %407 = vmatpush.msra.mxu0 0.0
    %408 = vmatpush.msra.mxu0 0.0
    %409 = vmatpush.msra.mxu0 0.0
    %410 = vmatpush.msra.mxu0 %v354
    %411 = vmatpush.msra.mxu0 %v352
    %412 = vmatmul.f32.gmra.mxu0 %v385
    %v413 = vpop.f32.mrf.mxu0
    %v414 = vadd.f32 %v367, %v413
    %415 = vmatmul.f32.gmra.mxu0 %v388
    %v416 = vpop.f32.mrf.mxu0
    %v417 = vadd.f32 %v372, %v416
    %418 = vmatmul.f32.gmra.mxu0 %v391
    %v419 = vpop.f32.mrf.mxu0
    %v420 = vadd.f32 %v377, %v419
    %421 = vmatmul.f32.gmra.mxu0 %v394
    %v422 = vpop.f32.mrf.mxu0
    %v423 = vadd.f32 %v382, %v422
    %424 = vdwg.mxu0
    %425 = vmatpush.msra.mxu0 0.0
    %426 = vmatpush.msra.mxu0 0.0
    %427 = vmatpush.msra.mxu0 0.0
    %428 = vmatpush.msra.mxu0 0.0
    %429 = vmatpush.msra.mxu0 0.0
    %430 = vmatpush.msra.mxu0 0.0
    %431 = vmatpush.msra.mxu0 0.0
    %432 = vmatpush.msra.mxu0 0.0
    %433 = vmatpush.msra.mxu0 0.0
    %434 = vmatpush.msra.mxu0 0.0
    %435 = vmatpush.msra.mxu0 0.0
    %436 = vmatpush.msra.mxu0 0.0
    %437 = vmatpush.msra.mxu0 0.0
    %438 = vmatpush.msra.mxu0 0.0
    %439 = vmatpush.msra.mxu0 %v355
    %440 = vmatpush.msra.mxu0 %v353
    %441 = vmatmul.f32.gmra.mxu0 %v385
    %v442 = vpop.f32.mrf.mxu0
    %v443 = vadd.f32 %v367, %v442
    %444 = vmatmul.f32.gmra.mxu0 %v388
    %v445 = vpop.f32.mrf.mxu0
    %v446 = vadd.f32 %v372, %v445
    %447 = vmatmul.f32.gmra.mxu0 %v391
    %v448 = vpop.f32.mrf.mxu0
    %v449 = vadd.f32 %v377, %v448
    %450 = vmatmul.f32.gmra.mxu0 %v394
    %v451 = vpop.f32.mrf.mxu0
    %v452 = vadd.f32 %v382, %v451
    %453 = vdwg.mxu0
    %v454 = vmax.f32 %v414, 0.0
    %v455 = vmax.f32 %v443, 0.0
    %v456 = vmax.f32 %v417, 0.0
    %v457 = vmax.f32 %v446, 0.0
    %v458 = vmax.f32 %v420, 0.0
    %v459 = vmax.f32 %v449, 0.0
    %v460 = vmax.f32 %v423, 0.0
    %v461 = vmax.f32 %v452, 0.0
    %462 = vst [vmem:[#allocation2] sm:$0xff] %v454
    %463 = vst [vmem:[#allocation2 + $0x8] sm:$0xff] %v455
    %464 = vst [vmem:[#allocation2 + $0x10] sm:$0xff] %v456
    %465 = vst [vmem:[#allocation2 + $0x18] sm:$0xff] %v457
    %466 = vst [vmem:[#allocation2 + $0x20] sm:$0xff] %v458
    %467 = vst [vmem:[#allocation2 + $0x28] sm:$0xff] %v459
    %468 = vst [vmem:[#allocation2 + $0x30] sm:$0xff] %v460
    %469 = vst [vmem:[#allocation2 + $0x38] sm:$0xff] %v461
    // Predicated region
    $region38: #{autoencoder_forward.1} parent=1 // pred_check
      _
    $region39: #{autoencoder_forward.1} parent=1 // pred_check_branch
      %471 = sbr.rel (0) target = $region41
    $region40: #{autoencoder_forward.1} parent=1 // pred_region
      %473 = vsyncadd [#allocation3], 0
      %s474 = sshll.u32 [#allocation2], 4
      %s475 = int_to_ptr.vmem [resolvable:$true] %s474
      %s476 = sshll.u32 %s9, 4
      %s477 = int_to_ptr.hbm [resolvable:$true] %s476
      %482 = dma.vmem_to_hbm [thread:$0]  %s475, 1024, %s477, [#allocation3], 256, 256, 16
    $region41: #{autoencoder_forward.1} parent=1 // pred_fallthru
      _
    // Predicated region
    $region42: #{autoencoder_forward.1} parent=1 // pred_check
      _
    $region43: #{autoencoder_forward.1} parent=1 // pred_check_branch
      %484 = sbr.rel (0) target = $region45
    $region44: #{autoencoder_forward.1} parent=1 // pred_region
      %486 = dma.done [#allocation3], 1024
    $region45: #{autoencoder_forward.1} parent=1 // pred_fallthru
      _
    %487 = vsyncpa [#allocation3], 1

</llo_original>
